<compile_context>
chip_gen: v7x
topology: tpu7x:2x2x1
jax: 0.10.0
libtpu: 0.0.40
codegen_flags: <defaults>
</compile_context>

<pallas_src>
import functools

import jax
import jax.numpy as jnp
from jax.experimental import pallas as pl
from jax.experimental.pallas import tpu as pltpu

HIDDEN_DIM = 64
IMF_NUMS = 2                      # exp_itme = 'our_2'
INPUT_DIM = IMF_NUMS + 2
OUT_DIM = INPUT_DIM
BN_EPS = 1e-5


def _drpk_kernel(k04, x_ref, w1_ref, b1_ref, gamma_ref, beta_ref,
                 w2_ref, b2_ref, recon_ref, weights_ref):
    x = x_ref[...]                                    # (B, INPUT_DIM)
    w1 = w1_ref[...]                                  # (INPUT_DIM, HIDDEN_DIM)
    B = x.shape[0]

    # fc1: depth-4 contraction as unrolled VPU broadcast multiply-adds
    # (avoids an MXU push/pop round-trip for a K=4 matmul).
    h = x[:, 0:1] * w1[0:1, :]
    for k in range(1, INPUT_DIM):
        h = h + x[:, k:k + 1] * w1[k:k + 1, :]
    h = h + b1_ref[...]                               # (B, HIDDEN_DIM)

    # BatchNorm1d (training-mode batch statistics, biased variance),
    # single-pass: var = E[h^2] - mean^2; scale/shift folded.
    inv_n = 1.0 / B
    mean = jnp.sum(h, axis=0, keepdims=True) * inv_n
    ex2 = jnp.sum(h * h, axis=0, keepdims=True) * inv_n
    var = ex2 - mean * mean
    scale = gamma_ref[...] * jax.lax.rsqrt(var + BN_EPS)
    shift = beta_ref[...] - mean * scale
    # fused normalize + affine + ReLU: one vmul + one vadd + one vmax per elem
    h = jnp.maximum(h * scale + shift, 0.0)

    # fc2 (contraction depth 64): keep on the MXU.
    w = jnp.dot(h, w2_ref[...], preferred_element_type=jnp.float32) + b2_ref[...]

    # Column-mask based assembly of the final weights (avoids lane slicing):
    #   col 0 and col OUT_DIM-1 -> sigmoid(w)
    #   middle cols             -> softmax over middle cols * K * 0.4
    col = jax.lax.broadcasted_iota(jnp.int32, w.shape, 1)
    sig = pl.reciprocal(1.0 + jnp.exp(-w), approx=True)        # EUP, not VALU div

    mid_mask = jnp.logical_and(col >= 1, col <= OUT_DIM - 2)
    masked = jnp.where(mid_mask, w, jnp.full_like(w, -jnp.inf))
    m = jnp.max(masked, axis=1, keepdims=True)
    e = jnp.where(mid_mask, jnp.exp(w - m), jnp.zeros_like(w))
    s = jnp.sum(e, axis=1, keepdims=True)
    soft = e * (pl.reciprocal(s, approx=True) * k04)           # k04 = K*0.4 static

    edge = jnp.logical_or(col == 0, col == OUT_DIM - 1)
    weights = jnp.where(edge, sig, soft)
    weights_ref[...] = weights

    # reconstructed_signal: PyTorch (B,) * (B,1) broadcast -> (B,B) == x @ weights.T.
    # Contract dim 1 of both operands so no transposed copy of `weights` is made.
    recon_ref[...] = jax.lax.dot_general(
        x, weights, (((1,), (1,)), ((), ())),
        preferred_element_type=jnp.float32)


@functools.partial(jax.jit, static_argnums=(3,))
def drpk_forward(pred, imfs, error, K, params):
    """pred, error: (B,1); imfs: list of (B,1); K: static Python scalar."""
    w1, b1, gamma, beta, w2, b2 = params
    x = jnp.concatenate([pred] + list(imfs) + [error], axis=1)   # (B, INPUT_DIM)
    B = x.shape[0]

    vmem = pl.BlockSpec(memory_space=pltpu.MemorySpace.VMEM)

    cost = pl.CostEstimate(
        flops=(2 * B * INPUT_DIM * HIDDEN_DIM          # fc1
               + 2 * B * HIDDEN_DIM * OUT_DIM          # fc2
               + 2 * B * INPUT_DIM * B                 # recon
               + 8 * B * HIDDEN_DIM),                  # BN / ReLU
        transcendentals=B * (2 * OUT_DIM + 3) + HIDDEN_DIM,
        bytes_accessed=4 * (x.size + w1.size + b1.size + gamma.size
                            + beta.size + w2.size + b2.size
                            + B * B + B * OUT_DIM),
    )

    recon, weights = pl.pallas_call(
        functools.partial(_drpk_kernel, float(K) * 0.4),
        out_shape=(jax.ShapeDtypeStruct((B, B), jnp.float32),
                   jax.ShapeDtypeStruct((B, OUT_DIM), jnp.float32)),
        in_specs=[vmem] * 7,
        out_specs=(vmem, vmem),
        cost_estimate=cost,
    )(x, w1, b1.reshape(1, -1), gamma.reshape(1, -1),
      beta.reshape(1, -1), w2, b2.reshape(1, -1))
    return recon, weights


def reference_forward(pred, imfs, error, K, params):
    """Pure-JAX mirror of the PyTorch forward (incl. the (B,B) broadcast)."""
    w1, b1, gamma, beta, w2, b2 = params
    x = jnp.concatenate([pred] + list(imfs) + [error], axis=1)
    h = x @ w1 + b1
    mean = jnp.mean(h, axis=0)
    var = jnp.mean((h - mean) ** 2, axis=0)
    h = (h - mean) / jnp.sqrt(var + BN_EPS) * gamma + beta
    h = jnp.maximum(h, 0.0)
    w = h @ w2 + b2
    w0 = jax.nn.sigmoid(w[:, 0:1])
    wl = jax.nn.sigmoid(w[:, -1:])
    mid = jax.nn.softmax(w[:, 1:-1], axis=1) * K * 0.4
    weights = jnp.concatenate([w0, mid, wl], axis=1)
    recon = weights[:, 0] * pred                       # (B,) * (B,1) -> (B,B)
    for i, imf in enumerate(imfs):
        recon = recon + weights[:, i + 1] * imf
    recon = recon + weights[:, -1] * error
    return recon, weights


if __name__ == "__main__":
    B = 8
    K = 2.0
    key = jax.random.PRNGKey(0)
    kp, ki0, ki1, ke, kw1, kb1, kw2, kb2 = jax.random.split(key, 8)

    pred = jax.random.normal(kp, (B, 1), dtype=jnp.float32)
    imfs = [jax.random.normal(ki0, (B, 1), dtype=jnp.float32),
            jax.random.normal(ki1, (B, 1), dtype=jnp.float32)]
    error = jax.random.normal(ke, (B, 1), dtype=jnp.float32)

    # Deterministic synthetic parameters (Linear stored as [in, out]).
    w1 = jax.random.normal(kw1, (INPUT_DIM, HIDDEN_DIM), dtype=jnp.float32) * 0.3
    b1 = jax.random.normal(kb1, (HIDDEN_DIM,), dtype=jnp.float32) * 0.1
    gamma = jnp.ones((HIDDEN_DIM,), dtype=jnp.float32)
    beta = jnp.zeros((HIDDEN_DIM,), dtype=jnp.float32)
    w2 = jax.random.normal(kw2, (HIDDEN_DIM, OUT_DIM), dtype=jnp.float32) * 0.3
    b2 = jax.random.normal(kb2, (OUT_DIM,), dtype=jnp.float32) * 0.1
    params = (w1, b1, gamma, beta, w2, b2)

    recon, weights = drpk_forward(pred, imfs, error, K, params)
    jax.block_until_ready((recon, weights))

    recon_ref, weights_ref = reference_forward(pred, imfs, error, K, params)
    assert recon.shape == (B, B) and weights.shape == (B, OUT_DIM)
    # Tolerance allows for the EUP approximate reciprocals (sigmoid / softmax
    # denominators) and the E[h^2]-mean^2 BatchNorm formulation.
    assert jnp.allclose(recon, recon_ref, atol=5e-3, rtol=5e-3)
    assert jnp.allclose(weights, weights_ref, atol=5e-3, rtol=5e-3)

    print("KERNEL_OK")
</pallas_src>

<mosaic_0001>
module attributes {stable_mosaic.version = 11 : i64} {
  func.func @_drpk_kernel(%arg0: memref<8x4xf32, #tpu.memory_space<vmem>>, %arg1: memref<4x64xf32, #tpu.memory_space<vmem>>, %arg2: memref<1x64xf32, #tpu.memory_space<vmem>>, %arg3: memref<1x64xf32, #tpu.memory_space<vmem>>, %arg4: memref<1x64xf32, #tpu.memory_space<vmem>>, %arg5: memref<64x4xf32, #tpu.memory_space<vmem>>, %arg6: memref<1x4xf32, #tpu.memory_space<vmem>>, %arg7: memref<8x8xf32, #tpu.memory_space<vmem>>, %arg8: memref<8x4xf32, #tpu.memory_space<vmem>>) attributes {dimension_semantics = [], scalar_prefetch = 0 : i64, scratch_operands = 0 : i64, tpu.core_type = #tpu.core_type<tc>} {
    %c0 = arith.constant 0 : index
    %c0_0 = arith.constant 0 : index
    %0 = vector.load %arg0[%c0, %c0_0] : memref<8x4xf32, #tpu.memory_space<vmem>>, vector<8x4xf32>
    %c0_1 = arith.constant 0 : index
    %c0_2 = arith.constant 0 : index
    %1 = vector.load %arg1[%c0_1, %c0_2] : memref<4x64xf32, #tpu.memory_space<vmem>>, vector<4x64xf32>
    %2 = vector.extract_strided_slice %0 {offsets = [0, 0], sizes = [8, 1], strides = [1, 1]} : vector<8x4xf32> to vector<8x1xf32>
    %3 = vector.extract_strided_slice %1 {offsets = [0, 0], sizes = [1, 64], strides = [1, 1]} : vector<4x64xf32> to vector<1x64xf32>
    %4 = vector.broadcast %2 : vector<8x1xf32> to vector<8x64xf32>
    %5 = vector.broadcast %3 : vector<1x64xf32> to vector<8x64xf32>
    %6 = arith.mulf %4, %5 : vector<8x64xf32>
    %7 = vector.extract_strided_slice %0 {offsets = [0, 1], sizes = [8, 1], strides = [1, 1]} : vector<8x4xf32> to vector<8x1xf32>
    %8 = vector.extract_strided_slice %1 {offsets = [1, 0], sizes = [1, 64], strides = [1, 1]} : vector<4x64xf32> to vector<1x64xf32>
    %9 = vector.broadcast %7 : vector<8x1xf32> to vector<8x64xf32>
    %10 = vector.broadcast %8 : vector<1x64xf32> to vector<8x64xf32>
    %11 = arith.mulf %9, %10 : vector<8x64xf32>
    %12 = arith.addf %6, %11 : vector<8x64xf32>
    %13 = vector.extract_strided_slice %0 {offsets = [0, 2], sizes = [8, 1], strides = [1, 1]} : vector<8x4xf32> to vector<8x1xf32>
    %14 = vector.extract_strided_slice %1 {offsets = [2, 0], sizes = [1, 64], strides = [1, 1]} : vector<4x64xf32> to vector<1x64xf32>
    %15 = vector.broadcast %13 : vector<8x1xf32> to vector<8x64xf32>
    %16 = vector.broadcast %14 : vector<1x64xf32> to vector<8x64xf32>
    %17 = arith.mulf %15, %16 : vector<8x64xf32>
    %18 = arith.addf %12, %17 : vector<8x64xf32>
    %19 = vector.extract_strided_slice %0 {offsets = [0, 3], sizes = [8, 1], strides = [1, 1]} : vector<8x4xf32> to vector<8x1xf32>
    %20 = vector.extract_strided_slice %1 {offsets = [3, 0], sizes = [1, 64], strides = [1, 1]} : vector<4x64xf32> to vector<1x64xf32>
    %21 = vector.broadcast %19 : vector<8x1xf32> to vector<8x64xf32>
    %22 = vector.broadcast %20 : vector<1x64xf32> to vector<8x64xf32>
    %23 = arith.mulf %21, %22 : vector<8x64xf32>
    %24 = arith.addf %18, %23 : vector<8x64xf32>
    %c0_3 = arith.constant 0 : index
    %c0_4 = arith.constant 0 : index
    %25 = vector.load %arg2[%c0_3, %c0_4] : memref<1x64xf32, #tpu.memory_space<vmem>>, vector<1x64xf32>
    %26 = vector.broadcast %25 : vector<1x64xf32> to vector<8x64xf32>
    %27 = arith.addf %24, %26 : vector<8x64xf32>
    %cst = arith.constant dense<0.000000e+00> : vector<64xf32>
    %28 = vector.multi_reduction <add>, %27, %cst [0] : vector<8x64xf32> to vector<64xf32>
    %29 = vector.shape_cast %28 : vector<64xf32> to vector<1x64xf32>
    %cst_5 = arith.constant 1.250000e-01 : f32
    %30 = vector.broadcast %cst_5 : f32 to vector<1x64xf32>
    %31 = arith.mulf %29, %30 : vector<1x64xf32>
    %32 = arith.mulf %27, %27 : vector<8x64xf32>
    %cst_6 = arith.constant dense<0.000000e+00> : vector<64xf32>
    %33 = vector.multi_reduction <add>, %32, %cst_6 [0] : vector<8x64xf32> to vector<64xf32>
    %34 = vector.shape_cast %33 : vector<64xf32> to vector<1x64xf32>
    %cst_7 = arith.constant 1.250000e-01 : f32
    %35 = vector.broadcast %cst_7 : f32 to vector<1x64xf32>
    %36 = arith.mulf %34, %35 : vector<1x64xf32>
    %37 = arith.mulf %31, %31 : vector<1x64xf32>
    %38 = arith.subf %36, %37 : vector<1x64xf32>
    %c0_8 = arith.constant 0 : index
    %c0_9 = arith.constant 0 : index
    %39 = vector.load %arg3[%c0_8, %c0_9] : memref<1x64xf32, #tpu.memory_space<vmem>>, vector<1x64xf32>
    %cst_10 = arith.constant 9.99999974E-6 : f32
    %40 = vector.broadcast %cst_10 : f32 to vector<1x64xf32>
    %41 = arith.addf %38, %40 : vector<1x64xf32>
    %42 = math.rsqrt %41 : vector<1x64xf32>
    %43 = arith.mulf %39, %42 : vector<1x64xf32>
    %c0_11 = arith.constant 0 : index
    %c0_12 = arith.constant 0 : index
    %44 = vector.load %arg4[%c0_11, %c0_12] : memref<1x64xf32, #tpu.memory_space<vmem>>, vector<1x64xf32>
    %45 = arith.mulf %31, %43 : vector<1x64xf32>
    %46 = arith.subf %44, %45 : vector<1x64xf32>
    %47 = vector.broadcast %43 : vector<1x64xf32> to vector<8x64xf32>
    %48 = arith.mulf %27, %47 : vector<8x64xf32>
    %49 = vector.broadcast %46 : vector<1x64xf32> to vector<8x64xf32>
    %50 = arith.addf %48, %49 : vector<8x64xf32>
    %cst_13 = arith.constant 0.000000e+00 : f32
    %51 = vector.broadcast %cst_13 : f32 to vector<8x64xf32>
    %52 = arith.maximumf %50, %51 : vector<8x64xf32>
    %c0_14 = arith.constant 0 : index
    %c0_15 = arith.constant 0 : index
    %53 = vector.load %arg5[%c0_14, %c0_15] : memref<64x4xf32, #tpu.memory_space<vmem>>, vector<64x4xf32>
    %cst_16 = arith.constant dense<0.000000e+00> : vector<8x4xf32>
    %54 = tpu.matmul %52, %53, %cst_16 {dimension_numbers = #tpu.dot_dimension_numbers<[1], [0], [0], [1], [0, 0, 1, 1], [], []>} : vector<8x64xf32>, vector<64x4xf32>, vector<8x4xf32> -> vector<8x4xf32>
    %c0_17 = arith.constant 0 : index
    %c0_18 = arith.constant 0 : index
    %55 = vector.load %arg6[%c0_17, %c0_18] : memref<1x4xf32, #tpu.memory_space<vmem>>, vector<1x4xf32>
    %56 = vector.broadcast %55 : vector<1x4xf32> to vector<8x4xf32>
    %57 = arith.addf %54, %56 : vector<8x4xf32>
    %58 = tpu.iota {dimensions = array<i32: 1>} : vector<8x4xi32>
    %cst_19 = arith.constant 0.000000e+00 : f32
    %59 = vector.broadcast %cst_19 : f32 to vector<8x4xf32>
    %60 = arith.subf %59, %57 : vector<8x4xf32>
    %61 = math.exp %60 : vector<8x4xf32>
    %cst_20 = arith.constant 1.000000e+00 : f32
    %62 = vector.broadcast %cst_20 : f32 to vector<8x4xf32>
    %63 = arith.addf %62, %61 : vector<8x4xf32>
    %64 = tpu.reciprocal %63 {approx = true} : vector<8x4xf32> -> vector<8x4xf32>
    %c1_i32 = arith.constant 1 : i32
    %65 = vector.broadcast %c1_i32 : i32 to vector<8x4xi32>
    %66 = arith.cmpi sge, %58, %65 : vector<8x4xi32>
    %c2_i32 = arith.constant 2 : i32
    %67 = vector.broadcast %c2_i32 : i32 to vector<8x4xi32>
    %68 = arith.cmpi sle, %58, %67 : vector<8x4xi32>
    %69 = arith.andi %66, %68 : vector<8x4xi1>
    %cst_21 = arith.constant 0xFF800000 : f32
    %70 = vector.broadcast %cst_21 : f32 to vector<8x4xf32>
    %71 = arith.select %69, %57, %70 : vector<8x4xi1>, vector<8x4xf32>
    %cst_22 = arith.constant dense<0xFF800000> : vector<8xf32>
    %72 = vector.multi_reduction <maximumf>, %71, %cst_22 [1] : vector<8x4xf32> to vector<8xf32>
    %73 = vector.shape_cast %72 : vector<8xf32> to vector<8x1xf32>
    %74 = vector.broadcast %73 : vector<8x1xf32> to vector<8x4xf32>
    %75 = arith.subf %57, %74 : vector<8x4xf32>
    %76 = math.exp %75 : vector<8x4xf32>
    %cst_23 = arith.constant 0.000000e+00 : f32
    %77 = vector.broadcast %cst_23 : f32 to vector<8x4xf32>
    %78 = arith.select %69, %76, %77 : vector<8x4xi1>, vector<8x4xf32>
    %cst_24 = arith.constant dense<0.000000e+00> : vector<8xf32>
    %79 = vector.multi_reduction <add>, %78, %cst_24 [1] : vector<8x4xf32> to vector<8xf32>
    %80 = vector.shape_cast %79 : vector<8xf32> to vector<8x1xf32>
    %81 = tpu.reciprocal %80 {approx = true} : vector<8x1xf32> -> vector<8x1xf32>
    %cst_25 = arith.constant 8.000000e-01 : f32
    %82 = vector.broadcast %cst_25 : f32 to vector<8x1xf32>
    %83 = arith.mulf %81, %82 : vector<8x1xf32>
    %84 = vector.broadcast %83 : vector<8x1xf32> to vector<8x4xf32>
    %85 = arith.mulf %78, %84 : vector<8x4xf32>
    %c0_i32 = arith.constant 0 : i32
    %86 = vector.broadcast %c0_i32 : i32 to vector<8x4xi32>
    %87 = arith.cmpi eq, %58, %86 : vector<8x4xi32>
    %c3_i32 = arith.constant 3 : i32
    %88 = vector.broadcast %c3_i32 : i32 to vector<8x4xi32>
    %89 = arith.cmpi eq, %58, %88 : vector<8x4xi32>
    %90 = arith.ori %87, %89 : vector<8x4xi1>
    %91 = arith.select %90, %64, %85 : vector<8x4xi1>, vector<8x4xf32>
    %c0_26 = arith.constant 0 : index
    %c0_27 = arith.constant 0 : index
    %92 = vector.load %arg8[%c0_26, %c0_27] : memref<8x4xf32, #tpu.memory_space<vmem>>, vector<8x4xf32>
    tpu.vector_store %arg8[%c0_26, %c0_27], %91 {strides = array<i32>} : memref<8x4xf32, #tpu.memory_space<vmem>>, vector<8x4xf32>,
    %cst_28 = arith.constant dense<0.000000e+00> : vector<8x8xf32>
    %93 = tpu.matmul %0, %91, %cst_28 {dimension_numbers = #tpu.dot_dimension_numbers<[1], [1], [0], [0], [0, 0, 1, 0], [], []>} : vector<8x4xf32>, vector<8x4xf32>, vector<8x8xf32> -> vector<8x8xf32>
    %c0_29 = arith.constant 0 : index
    %c0_30 = arith.constant 0 : index
    %94 = vector.load %arg7[%c0_29, %c0_30] : memref<8x8xf32, #tpu.memory_space<vmem>>, vector<8x8xf32>
    tpu.vector_store %arg7[%c0_29, %c0_30], %93 {strides = array<i32>} : memref<8x8xf32, #tpu.memory_space<vmem>>, vector<8x8xf32>,
    return
  }
}

</mosaic_0001>

<llo_original>
// kernel: drpk_forward.1
$region0: #{drpk_forward.1}
  #allocation0 [shape = 'u32[]', space=smem, size = 0x4, offset = 0x4, fixed_abs, tag = 'smem constant byte address 0x4 - core index']
  #allocation1 [shape = 'u32[144,128]{1,0:T(1,128)}', space=vmem, size = 0x12000, scoped, tag = 'internal scratch']
  %s0 = inlined_call_operand.vmem [shape: f32[8,4], index: 0, kind: input, shape index: {}]
  %s1 = inlined_call_operand.vmem [shape: f32[4,64], index: 1, kind: input, shape index: {}]
  %s2 = inlined_call_operand.vmem [shape: f32[1,64], index: 2, kind: input, shape index: {}]
  %s3 = inlined_call_operand.vmem [shape: f32[1,64], index: 3, kind: input, shape index: {}]
  %s4 = inlined_call_operand.vmem [shape: f32[1,64], index: 4, kind: input, shape index: {}]
  %s5 = inlined_call_operand.vmem [shape: f32[64,4], index: 5, kind: input, shape index: {}]
  %s6 = inlined_call_operand.vmem [shape: f32[1,4], index: 6, kind: input, shape index: {}]
  %s7 = inlined_call_operand.hbm [shape: f32[8,8], index: 7, kind: output, shape index: {0}]
  %s8 = inlined_call_operand.vmem [shape: f32[8,4], index: 8, kind: output, shape index: {1}]
  %9 = xla_tuple %s7, %s8
  %s10 = sld [smem:[#allocation0]]
  $region46: #{drpk_forward.1} parent=0
    _
  %s12 = ssub.s32 1, %s10
  %s13 = scalar_select 0, %s12, %s10
  $region1: #{drpk_forward.1} parent=0
    #allocation2 [shape = 'u8[4096]{0}', space=vmem, size = 0x1000, scoped, tag = 'output window, operand 0, single buffered']
    #allocation3 [shape = 's32[1]{0}', space=sflag, size = 0x4, scoped, tag = 'scoped memory for drpk_forward.1']
    %14 = vsyncpa [#allocation3], 0
    // Predicated region
    $region2: #{drpk_forward.1} parent=1 // pred_check
      _
    $region3: #{drpk_forward.1} parent=1 // pred_check_branch
      %16 = sbr.rel (0) target = $region5
    $region4: #{drpk_forward.1} parent=1 // pred_region
      _
    $region5: #{drpk_forward.1} parent=1 // pred_fallthru
      _
    // Predicated region
    $region6: #{drpk_forward.1} parent=1 // pred_check
      _
    $region7: #{drpk_forward.1} parent=1 // pred_check_branch
      %18 = sbr.rel (0) target = $region9
    $region8: #{drpk_forward.1} parent=1 // pred_region
      _
    $region9: #{drpk_forward.1} parent=1 // pred_fallthru
      _
    // Predicated region
    $region10: #{drpk_forward.1} parent=1 // pred_check
      _
    $region11: #{drpk_forward.1} parent=1 // pred_check_branch
      %20 = sbr.rel (0) target = $region13
    $region12: #{drpk_forward.1} parent=1 // pred_region
      _
    $region13: #{drpk_forward.1} parent=1 // pred_fallthru
      _
    // Predicated region
    $region14: #{drpk_forward.1} parent=1 // pred_check
      _
    $region15: #{drpk_forward.1} parent=1 // pred_check_branch
      %22 = sbr.rel (0) target = $region17
    $region16: #{drpk_forward.1} parent=1 // pred_region
      _
    $region17: #{drpk_forward.1} parent=1 // pred_fallthru
      _
    // Predicated region
    $region18: #{drpk_forward.1} parent=1 // pred_check
      _
    $region19: #{drpk_forward.1} parent=1 // pred_check_branch
      %24 = sbr.rel (0) target = $region21
    $region20: #{drpk_forward.1} parent=1 // pred_region
      _
    $region21: #{drpk_forward.1} parent=1 // pred_fallthru
      _
    // Predicated region
    $region22: #{drpk_forward.1} parent=1 // pred_check
      _
    $region23: #{drpk_forward.1} parent=1 // pred_check_branch
      %26 = sbr.rel (0) target = $region25
    $region24: #{drpk_forward.1} parent=1 // pred_region
      _
    $region25: #{drpk_forward.1} parent=1 // pred_fallthru
      _
    // Predicated region
    $region26: #{drpk_forward.1} parent=1 // pred_check
      _
    $region27: #{drpk_forward.1} parent=1 // pred_check_branch
      %28 = sbr.rel (0) target = $region29
    $region28: #{drpk_forward.1} parent=1 // pred_region
      _
    $region29: #{drpk_forward.1} parent=1 // pred_fallthru
      _
    %v29 = vld [vmem:[%s0] sm:$0xff]
    %v30 = vld [vmem:[%s1] sm:$0xf]
    %32 = vset.pattern.permute.xlu0 0
    %33 = vperm.xlu0 %32, %v29
    %v34 = vpop.permute.xlu0 %33
    %v36 = vlaneseq
    %v37 = vshrl.u32 %v36, 7
    %v38 = vsub.s32 0, %v37
    %v39 = vrot.slane %v30, %v38
    %v40 = vmul.f32 %v34, %v39
    %41 = vset.pattern.permute.xlu0 1
    %42 = vperm.xlu0 %41, %v29
    %v43 = vpop.permute.xlu0 %42
    %v45 = vlaneseq
    %v46 = vshrl.u32 %v45, 7
    %v47 = vsub.s32 1, %v46
    %v48 = vrot.slane %v30, %v47
    %v49 = vmul.f32 %v43, %v48
    %v50 = vadd.f32 %v40, %v49
    %51 = vset.pattern.permute.xlu0 2
    %52 = vperm.xlu0 %51, %v29
    %v53 = vpop.permute.xlu0 %52
    %v55 = vlaneseq
    %v56 = vshrl.u32 %v55, 7
    %v57 = vsub.s32 2, %v56
    %v58 = vrot.slane %v30, %v57
    %v59 = vmul.f32 %v53, %v58
    %v60 = vadd.f32 %v50, %v59
    %61 = vset.pattern.permute.xlu0 3
    %62 = vperm.xlu0 %61, %v29
    %v63 = vpop.permute.xlu0 %62
    %v65 = vlaneseq
    %v66 = vshrl.u32 %v65, 7
    %v67 = vsub.s32 3, %v66
    %v68 = vrot.slane %v30, %v67
    %v69 = vmul.f32 %v63, %v68
    %v70 = vadd.f32 %v60, %v69
    %v71 = vld [vmem:[%s2] sm:$0x1]
    %v73 = vlaneseq
    %v74 = vshrl.u32 %v73, 7
    %v75 = vsub.s32 0, %v74
    %v76 = vrot.slane %v71, %v75
    %v78 = vadd.f32 %v70, %v76
    %vm79 = vcmask 523264
    %v80 = vsel %vm79, %v78, 0.0
    %v81 = vrot.slane %v80, 4
    %v82 = vadd.f32 %v80, %v81
    %v83 = vrot.slane %v82, 2
    %v84 = vadd.f32 %v82, %v83
    %v85 = vrot.slane %v84, 1
    %v86 = vadd.f32 %v84, %v85
    %v87 = vmul.f32 %v86, 0.125
    %v88 = vmul.f32 %v78, %v78
    %v89 = vsel %vm79, %v88, 0.0
    %v90 = vrot.slane %v89, 4
    %v91 = vadd.f32 %v89, %v90
    %v92 = vrot.slane %v91, 2
    %v93 = vadd.f32 %v91, %v92
    %v94 = vrot.slane %v93, 1
    %v95 = vadd.f32 %v93, %v94
    %v96 = vmul.f32 %v95, 0.125
    %v97 = vmul.f32 %v87, %v87
    %v98 = vsub.f32 %v96, %v97
    %v99 = vld [vmem:[%s3] sm:$0x1]
    %v100 = vadd.f32 %v98, 1e-05
    %v101 = vrsqrt.pop %v100
    %v102 = vmul.f32 %v99, %v101
    %v103 = vld [vmem:[%s4] sm:$0x1]
    %v104 = vmul.f32 %v87, %v102
    %v105 = vsub.f32 %v103, %v104
    %v107 = vlaneseq
    %v108 = vshrl.u32 %v107, 7
    %v109 = vsub.s32 0, %v108
    %v110 = vrot.slane %v102, %v109
    %v112 = vmul.f32 %v78, %v110
    %v114 = vlaneseq
    %v115 = vshrl.u32 %v114, 7
    %v116 = vsub.s32 0, %v115
    %v117 = vrot.slane %v105, %v116
    %v119 = vadd.f32 %v112, %v117
    %v120 = vmax.f32 %v119, 0.0
    %v121 = vld [vmem:[%s5] sm:$0xff]
    %v122 = vld [vmem:[%s5 + $0x8] sm:$0xff]
    %v123 = vld [vmem:[%s5 + $0x10] sm:$0xff]
    %v124 = vld [vmem:[%s5 + $0x18] sm:$0xff]
    %v125 = vld [vmem:[%s5 + $0x20] sm:$0xff]
    %v126 = vld [vmem:[%s5 + $0x28] sm:$0xff]
    %v127 = vld [vmem:[%s5 + $0x30] sm:$0xff]
    %v128 = vld [vmem:[%s5 + $0x38] sm:$0xff]
    %v129 = vld [vmem:[%s6] sm:$0x1]
    %v131 = vlaneseq
    %v132 = vshrl.u32 %v131, 7
    %v133 = vsub.s32 0, %v132
    %v134 = vrot.slane %v129, %v133
    %v137 = vsel %vm79, %v120, 0
    %139 = vmatprep.subr.mxu0 0.0
    %140 = vmatpush1.msra.mxu0 %v121
    %141 = vmatprep.subr.mxu0 0.0
    %142 = vmatpush1.msra.mxu0 %v122
    %143 = vmatprep.subr.mxu0 0.0
    %144 = vmatpush1.msra.mxu0 %v123
    %145 = vmatprep.subr.mxu0 0.0
    %146 = vmatpush1.msra.mxu0 %v124
    %147 = vmatprep.subr.mxu0 0.0
    %148 = vmatpush1.msra.mxu0 %v125
    %149 = vmatprep.subr.mxu0 0.0
    %150 = vmatpush1.msra.mxu0 %v126
    %151 = vmatprep.subr.mxu0 0.0
    %152 = vmatpush1.msra.mxu0 %v127
    %153 = vmatprep.subr.mxu0 0.0
    %154 = vmatpush1.msra.mxu0 %v128
    %155 = vmatprep.subr.mxu0 0.0
    %156 = vmatpush1.msra.mxu0 0.0
    %157 = vmatprep.subr.mxu0 0.0
    %158 = vmatpush1.msra.mxu0 0.0
    %159 = vmatprep.subr.mxu0 0.0
    %160 = vmatpush1.msra.mxu0 0.0
    %161 = vmatprep.subr.mxu0 0.0
    %162 = vmatpush1.msra.mxu0 0.0
    %163 = vmatprep.subr.mxu0 0.0
    %164 = vmatpush1.msra.mxu0 0.0
    %165 = vmatprep.subr.mxu0 0.0
    %166 = vmatpush1.msra.mxu0 0.0
    %167 = vmatprep.subr.mxu0 0.0
    %168 = vmatpush1.msra.mxu0 0.0
    %169 = vmatprep.subr.mxu0 0.0
    %170 = vmatpush1.msra.mxu0 0.0
    %171 = vmatprep.subr.mxu0 0.0
    %172 = vmatpush1.msra.mxu0 0.0
    %173 = vmatprep.subr.mxu0 0.0
    %174 = vmatpush1.msra.mxu0 0.0
    %175 = vmatprep.subr.mxu0 0.0
    %176 = vmatpush1.msra.mxu0 0.0
    %177 = vmatprep.subr.mxu0 0.0
    %178 = vmatpush1.msra.mxu0 0.0
    %179 = vmatprep.subr.mxu0 0.0
    %180 = vmatpush1.msra.mxu0 0.0
    %181 = vmatprep.subr.mxu0 0.0
    %182 = vmatpush1.msra.mxu0 0.0
    %183 = vmatprep.subr.mxu0 0.0
    %184 = vmatpush1.msra.mxu0 0.0
    %185 = vmatprep.subr.mxu0 0.0
    %186 = vmatpush1.msra.mxu0 0.0
    %187 = vmatprep.subr.mxu0 0.0
    %188 = vmatpush1.msra.mxu0 0.0
    %189 = vmatprep.subr.mxu0 0.0
    %190 = vmatpush1.msra.mxu0 0.0
    %191 = vmatprep.subr.mxu0 0.0
    %192 = vmatpush1.msra.mxu0 0.0
    %193 = vmatprep.subr.mxu0 0.0
    %194 = vmatpush1.msra.mxu0 0.0
    %195 = vmatprep.subr.mxu0 0.0
    %196 = vmatpush1.msra.mxu0 0.0
    %197 = vmatprep.subr.mxu0 0.0
    %198 = vmatpush1.msra.mxu0 0.0
    %199 = vmatprep.subr.mxu0 0.0
    %200 = vmatpush1.msra.mxu0 0.0
    %201 = vmatprep.subr.mxu0 0.0
    %202 = vmatpush1.msra.mxu0 0.0
    %203 = vmatprep.mubr.f32.mxu0 0.0
    %204 = vmatmul.mubr.f32.gmra.mrb[0].mxu0 %v137
    %v205 = vpop.f32.mrb[0].mxu0
    %v206 = vadd.f32 %v134, %v205
    %v207 = vpop.f32.mrb[0].mxu0
    %208 = vdwg.mxu0
    %v209 = vlaneseq
    %v210 = vand.u32 %v209, 127
    %v211 = vsub.f32 0.0, %v206
    %v212 = vmul.f32 %v211, 1.442695
    %v213 = vpow.pop %v212
    %v214 = vadd.f32 %v213, 1.0
    %v215 = vrcp.pop %v214
    %vm216 = vcmp.ge.s32.totalorder %v210, 1
    %vm217 = vcmp.le.s32.totalorder %v210, 2
    %vm218 = vmand %vm216, %vm217
    %v219 = vsel %vm218, %v206, -inf
    %vm220 = vcmask 31744
    %v221 = vsel %vm220, %v219, -inf
    %222 = vmax.xlane.f32.xlu0 %v221
    %v223 = vpop.xlane.xlu0 %222
    %v224 = vsub.f32 %v206, %v223
    %v225 = vmul.f32 %v224, 1.442695
    %v226 = vpow.pop %v225
    %v227 = vsel %vm218, %v226, 0.0
    %v228 = vsel %vm220, %v227, 0.0
    %229 = vadd.xlane.f32.xlu0 %v228
    %v230 = vpop.xlane.xlu0 %229
    %v231 = vrcp.pop %v230
    %v232 = vmul.f32 %v231, 0.8
    %v233 = vmul.f32 %v227, %v232
    %vm234 = vcmp.eq.s32.totalorder %v210, 0
    %vm235 = vcmp.eq.s32.totalorder %v210, 3
    %vm236 = vmor %vm234, %vm235
    %v237 = vsel %vm236, %v215, %v233
    %238 = vst.msk [vmem:[%s8] sm:$0xff] %vm220, %v237
    %v239 = vsel %vm220, %v29, 0
    %v242 = vsel %vm220, %v237, 0
    %244 = vmatprep.subr.mxu0 0.0
    %245 = vmatpush1.xpose.msra.mxu0 %v242
    %246 = vmatprep.subr.mxu0 0.0
    %247 = vmatpush1.xpose.msra.mxu0 0.0
    %248 = vmatprep.subr.mxu0 0.0
    %249 = vmatpush1.xpose.msra.mxu0 0.0
    %250 = vmatprep.subr.mxu0 0.0
    %251 = vmatpush1.xpose.msra.mxu0 0.0
    %252 = vmatprep.subr.mxu0 0.0
    %253 = vmatpush1.xpose.msra.mxu0 0.0
    %254 = vmatprep.subr.mxu0 0.0
    %255 = vmatpush1.xpose.msra.mxu0 0.0
    %256 = vmatprep.subr.mxu0 0.0
    %257 = vmatpush1.xpose.msra.mxu0 0.0
    %258 = vmatprep.subr.mxu0 0.0
    %259 = vmatpush1.xpose.msra.mxu0 0.0
    %260 = vmatprep.subr.mxu0 0.0
    %261 = vmatpush1.xpose.msra.mxu0 0.0
    %262 = vmatprep.subr.mxu0 0.0
    %263 = vmatpush1.xpose.msra.mxu0 0.0
    %264 = vmatprep.subr.mxu0 0.0
    %265 = vmatpush1.xpose.msra.mxu0 0.0
    %266 = vmatprep.subr.mxu0 0.0
    %267 = vmatpush1.xpose.msra.mxu0 0.0
    %268 = vmatprep.subr.mxu0 0.0
    %269 = vmatpush1.xpose.msra.mxu0 0.0
    %270 = vmatprep.subr.mxu0 0.0
    %271 = vmatpush1.xpose.msra.mxu0 0.0
    %272 = vmatprep.subr.mxu0 0.0
    %273 = vmatpush1.xpose.msra.mxu0 0.0
    %274 = vmatprep.subr.mxu0 0.0
    %275 = vmatpush1.xpose.msra.mxu0 0.0
    %276 = vmatprep.subr.mxu0 0.0
    %277 = vmatpush1.xpose.msra.mxu0 0.0
    %278 = vmatprep.subr.mxu0 0.0
    %279 = vmatpush1.xpose.msra.mxu0 0.0
    %280 = vmatprep.subr.mxu0 0.0
    %281 = vmatpush1.xpose.msra.mxu0 0.0
    %282 = vmatprep.subr.mxu0 0.0
    %283 = vmatpush1.xpose.msra.mxu0 0.0
    %284 = vmatprep.subr.mxu0 0.0
    %285 = vmatpush1.xpose.msra.mxu0 0.0
    %286 = vmatprep.subr.mxu0 0.0
    %287 = vmatpush1.xpose.msra.mxu0 0.0
    %288 = vmatprep.subr.mxu0 0.0
    %289 = vmatpush1.xpose.msra.mxu0 0.0
    %290 = vmatprep.subr.mxu0 0.0
    %291 = vmatpush1.xpose.msra.mxu0 0.0
    %292 = vmatprep.subr.mxu0 0.0
    %293 = vmatpush1.xpose.msra.mxu0 0.0
    %294 = vmatprep.subr.mxu0 0.0
    %295 = vmatpush1.xpose.msra.mxu0 0.0
    %296 = vmatprep.subr.mxu0 0.0
    %297 = vmatpush1.xpose.msra.mxu0 0.0
    %298 = vmatprep.subr.mxu0 0.0
    %299 = vmatpush1.xpose.msra.mxu0 0.0
    %300 = vmatprep.subr.mxu0 0.0
    %301 = vmatpush1.xpose.msra.mxu0 0.0
    %302 = vmatprep.subr.mxu0 0.0
    %303 = vmatpush1.xpose.msra.mxu0 0.0
    %304 = vmatprep.subr.mxu0 0.0
    %305 = vmatpush1.xpose.msra.mxu0 0.0
    %306 = vmatprep.subr.mxu0 0.0
    %307 = vmatpush1.xpose.msra.mxu0 0.0
    %308 = vmatprep.mubr.f32.mxu0 0.0
    %309 = vmatmul.mubr.f32.gmra.mrb[0].mxu0 %v239
    %v310 = vpop.f32.mrb[0].mxu0
    %v311 = vadd.f32 0.0, %v310
    %v312 = vpop.f32.mrb[0].mxu0
    %313 = vdwg.mxu0
    %vm314 = vcmask 64512
    %315 = vst.msk [vmem:[#allocation2] sm:$0xff] %vm314, %v311
    // Predicated region
    $region30: #{drpk_forward.1} parent=1 // pred_check
      _
    $region31: #{drpk_forward.1} parent=1 // pred_check_branch
      %317 = sbr.rel (0) target = $region33
    $region32: #{drpk_forward.1} parent=1 // pred_region
      %s319 = ssub.s32 128, 128
      %320 = vsyncadd [#allocation3], %s319
      %s322 = sshll.u32 [#allocation2], 4
      %s323 = int_to_ptr.vmem [resolvable:$true] %s322
      %325 = dma.vmem_to_hbm [thread:$0]  %s323, 128, %s7, [#allocation3]
    $region33: #{drpk_forward.1} parent=1 // pred_fallthru
      _
    // Predicated region
    $region34: #{drpk_forward.1} parent=1 // pred_check
      _
    $region35: #{drpk_forward.1} parent=1 // pred_check_branch
      %327 = sbr.rel (0) target = $region37
    $region36: #{drpk_forward.1} parent=1 // pred_region
      _
    $region37: #{drpk_forward.1} parent=1 // pred_fallthru
      _
    // Predicated region
    $region38: #{drpk_forward.1} parent=1 // pred_check
      _
    $region39: #{drpk_forward.1} parent=1 // pred_check_branch
      %329 = sbr.rel (0) target = $region41
    $region40: #{drpk_forward.1} parent=1 // pred_region
      %330 = dma.done [#allocation3], 128
    $region41: #{drpk_forward.1} parent=1 // pred_fallthru
      _
    // Predicated region
    $region42: #{drpk_forward.1} parent=1 // pred_check
      _
    $region43: #{drpk_forward.1} parent=1 // pred_check_branch
      %332 = sbr.rel (0) target = $region45
    $region44: #{drpk_forward.1} parent=1 // pred_region
      _
    $region45: #{drpk_forward.1} parent=1 // pred_fallthru
      _
    %333 = vsyncpa [#allocation3], 1

</llo_original>
